<compile_context>
chip_gen: v7x
topology: tpu7x:2x2x1
jax: 0.10.0
libtpu: 0.0.40
codegen_flags: <defaults>
</compile_context>

<pallas_src>
import jax
import jax.numpy as jnp
from jax.experimental import pallas as pl
from jax.experimental.pallas import tpu as pltpu


def _make_lstm_kernel(T, B, H):
    """Build the kernel with static T/B/H captured (fully unrolled time loop)."""

    def kernel(x_ref, wih_ref, whh_ref, b_ref, out_ref):
        # ---- Whole-sequence input projection: one MXU matmul with M = T*B ----
        # pre_gates[t*B + b, :] = x[t, b, :] @ W_ih^T + (b_ih + b_hh)
        pre_gates = (
            jnp.dot(x_ref[...], wih_ref[...], preferred_element_type=jnp.float32)
            + b_ref[...]
        )                                    # (T*B, 4H), ~32 KB f32, stays in vregs/VMEM
        whh = whh_ref[...]                   # (H, 4H), loaded once, reused every step

        h = jnp.zeros((B, H), jnp.float32)   # recurrent state carried in vregs
        c = jnp.zeros((B, H), jnp.float32)

        # Fully unrolled recurrence: only h @ W_hh^T + elementwise per step.
        for t in range(T):
            gates = pre_gates[t * B:(t + 1) * B, :] + jnp.dot(
                h, whh, preferred_element_type=jnp.float32)      # (B, 4H)

            # Two full-width EUP passes instead of four 32-lane activation calls.
            sig = jax.nn.sigmoid(gates)
            th = jnp.tanh(gates)

            i_g = sig[:, 0 * H:1 * H]
            f_g = sig[:, 1 * H:2 * H]
            g_g = th[:, 2 * H:3 * H]
            o_g = sig[:, 3 * H:4 * H]

            c = f_g * c + i_g * g_g
            h = o_g * jnp.tanh(c)

            # Lane-dense output slab (B, T*H); static 32-lane slice per step,
            # single dense HBM writeback at kernel end.
            out_ref[:, t * H:(t + 1) * H] = h

    return kernel


def gentle_push_late_lstm(x, w_ih, w_hh, b_ih, b_hh):
    """x: (T, B, D_in) float32 (time-major, PyTorch default layout).
       Weights in PyTorch layout: w_ih (4H, D_in), w_hh (4H, H), b_ih/b_hh (4H,).
       Returns (T, B, H) — the full hidden-state sequence (module returns x only)."""
    T, B, D_in = x.shape
    four_h = w_ih.shape[0]
    H = four_h // 4

    # Glue (plain JAX): pre-transpose weights so the 4H gate axis is on lanes,
    # fuse the two biases, and flatten time into the matmul M dimension.
    x_flat = jnp.asarray(x, jnp.float32).reshape(T * B, D_in)
    wih_t = jnp.asarray(w_ih, jnp.float32).T                  # (D_in, 4H)
    whh_t = jnp.asarray(w_hh, jnp.float32).T                  # (H, 4H)
    bias = (jnp.asarray(b_ih, jnp.float32)
            + jnp.asarray(b_hh, jnp.float32)).reshape(1, four_h)

    vmem = pltpu.MemorySpace.VMEM
    out_slab = pl.pallas_call(
        _make_lstm_kernel(T, B, H),
        out_shape=jax.ShapeDtypeStruct((B, T * H), jnp.float32),
        in_specs=[
            pl.BlockSpec(memory_space=vmem),   # x_flat   (T*B, D_in)
            pl.BlockSpec(memory_space=vmem),   # W_ih^T   (D_in, 4H)
            pl.BlockSpec(memory_space=vmem),   # W_hh^T   (H, 4H)
            pl.BlockSpec(memory_space=vmem),   # bias     (1, 4H)
        ],
        out_specs=pl.BlockSpec(memory_space=vmem),
    )(x_flat, wih_t, whh_t, bias)

    # (B, T*H) -> (T, B, H): out_slab[b, t*H + j] == h_t[b, j]
    return out_slab.reshape(B, T, H).transpose(1, 0, 2)


def lstm_reference(x, w_ih, w_hh, b_ih, b_hh):
    """Pure-JAX reference matching torch.nn.LSTM forward (1 layer, h0=c0=0)."""
    T, B, _ = x.shape
    H = w_hh.shape[1]
    bias = b_ih + b_hh

    def step(carry, x_t):
        h, c = carry
        gates = x_t @ w_ih.T + h @ w_hh.T + bias
        i_g = jax.nn.sigmoid(gates[:, 0 * H:1 * H])
        f_g = jax.nn.sigmoid(gates[:, 1 * H:2 * H])
        g_g = jnp.tanh(gates[:, 2 * H:3 * H])
        o_g = jax.nn.sigmoid(gates[:, 3 * H:4 * H])
        c_new = f_g * c + i_g * g_g
        h_new = o_g * jnp.tanh(c_new)
        return (h_new, c_new), h_new

    init = (jnp.zeros((B, H), jnp.float32), jnp.zeros((B, H), jnp.float32))
    _, hs = jax.lax.scan(step, init, x)
    return hs


if __name__ == "__main__":
    # Small shapes consistent with the module: seq=8, batch=8, input=16, hidden=32.
    T, B, D_IN, HID = 8, 8, 16, 32

    key = jax.random.PRNGKey(0)
    k_x, k1, k2, k3, k4 = jax.random.split(key, 5)

    # Deterministic init ~ PyTorch's U(-1/sqrt(H), 1/sqrt(H)).
    bound = 1.0 / jnp.sqrt(jnp.float32(HID))
    x = jax.random.normal(k_x, (T, B, D_IN), dtype=jnp.float32)
    w_ih = jax.random.uniform(k1, (4 * HID, D_IN), jnp.float32, -bound, bound)
    w_hh = jax.random.uniform(k2, (4 * HID, HID), jnp.float32, -bound, bound)
    b_ih = jax.random.uniform(k3, (4 * HID,), jnp.float32, -bound, bound)
    b_hh = jax.random.uniform(k4, (4 * HID,), jnp.float32, -bound, bound)

    out = gentle_push_late_lstm(x, w_ih, w_hh, b_ih, b_hh)
    out = jax.block_until_ready(out)

    ref = lstm_reference(x, w_ih, w_hh, b_ih, b_hh)
    assert out.shape == (T, B, HID)
    assert jnp.allclose(out, ref, atol=1e-5, rtol=1e-5), "mismatch vs reference"

    print("KERNEL_OK")
</pallas_src>

<mosaic_0001>
module attributes {stable_mosaic.version = 11 : i64} {
  func.func @kernel(%arg0: memref<64x16xf32, #tpu.memory_space<vmem>>, %arg1: memref<16x128xf32, #tpu.memory_space<vmem>>, %arg2: memref<32x128xf32, #tpu.memory_space<vmem>>, %arg3: memref<1x128xf32, #tpu.memory_space<vmem>>, %arg4: memref<8x256xf32, #tpu.memory_space<vmem>>) attributes {dimension_semantics = [], scalar_prefetch = 0 : i64, scratch_operands = 0 : i64, tpu.core_type = #tpu.core_type<tc>} {
    %c0 = arith.constant 0 : index
    %c0_0 = arith.constant 0 : index
    %0 = vector.load %arg0[%c0, %c0_0] : memref<64x16xf32, #tpu.memory_space<vmem>>, vector<64x16xf32>
    %c0_1 = arith.constant 0 : index
    %c0_2 = arith.constant 0 : index
    %1 = vector.load %arg1[%c0_1, %c0_2] : memref<16x128xf32, #tpu.memory_space<vmem>>, vector<16x128xf32>
    %cst = arith.constant dense<0.000000e+00> : vector<64x128xf32>
    %2 = tpu.matmul %0, %1, %cst {dimension_numbers = #tpu.dot_dimension_numbers<[1], [0], [0], [1], [0, 0, 1, 1], [], []>} : vector<64x16xf32>, vector<16x128xf32>, vector<64x128xf32> -> vector<64x128xf32>
    %c0_3 = arith.constant 0 : index
    %c0_4 = arith.constant 0 : index
    %3 = vector.load %arg3[%c0_3, %c0_4] : memref<1x128xf32, #tpu.memory_space<vmem>>, vector<1x128xf32>
    %4 = vector.broadcast %3 : vector<1x128xf32> to vector<64x128xf32>
    %5 = arith.addf %2, %4 : vector<64x128xf32>
    %c0_5 = arith.constant 0 : index
    %c0_6 = arith.constant 0 : index
    %6 = vector.load %arg2[%c0_5, %c0_6] : memref<32x128xf32, #tpu.memory_space<vmem>>, vector<32x128xf32>
    %cst_7 = arith.constant 0.000000e+00 : f32
    %7 = vector.broadcast %cst_7 : f32 to vector<8x32xf32>
    %cst_8 = arith.constant 0.000000e+00 : f32
    %8 = vector.broadcast %cst_8 : f32 to vector<8x32xf32>
    %9 = vector.extract_strided_slice %5 {offsets = [0, 0], sizes = [8, 128], strides = [1, 1]} : vector<64x128xf32> to vector<8x128xf32>
    %cst_9 = arith.constant dense<0.000000e+00> : vector<8x128xf32>
    %10 = tpu.matmul %7, %6, %cst_9 {dimension_numbers = #tpu.dot_dimension_numbers<[1], [0], [0], [1], [0, 0, 1, 1], [], []>} : vector<8x32xf32>, vector<32x128xf32>, vector<8x128xf32> -> vector<8x128xf32>
    %11 = arith.addf %9, %10 : vector<8x128xf32>
    %12 = arith.negf %11 : vector<8x128xf32>
    %13 = math.exp %12 : vector<8x128xf32>
    %cst_10 = arith.constant 1.000000e+00 : f32
    %14 = vector.broadcast %cst_10 : f32 to vector<8x128xf32>
    %15 = arith.addf %14, %13 : vector<8x128xf32>
    %16 = arith.divf %14, %15 : vector<8x128xf32>
    %17 = math.tanh %11 : vector<8x128xf32>
    %18 = vector.extract_strided_slice %16 {offsets = [0, 0], sizes = [8, 32], strides = [1, 1]} : vector<8x128xf32> to vector<8x32xf32>
    %19 = vector.extract_strided_slice %16 {offsets = [0, 32], sizes = [8, 32], strides = [1, 1]} : vector<8x128xf32> to vector<8x32xf32>
    %20 = vector.extract_strided_slice %17 {offsets = [0, 64], sizes = [8, 32], strides = [1, 1]} : vector<8x128xf32> to vector<8x32xf32>
    %21 = vector.extract_strided_slice %16 {offsets = [0, 96], sizes = [8, 32], strides = [1, 1]} : vector<8x128xf32> to vector<8x32xf32>
    %22 = arith.mulf %19, %8 : vector<8x32xf32>
    %23 = arith.mulf %18, %20 : vector<8x32xf32>
    %24 = arith.addf %22, %23 : vector<8x32xf32>
    %25 = math.tanh %24 : vector<8x32xf32>
    %26 = arith.mulf %21, %25 : vector<8x32xf32>
    %c0_11 = arith.constant 0 : index
    %c0_12 = arith.constant 0 : index
    %27 = vector.load %arg4[%c0_11, %c0_12] : memref<8x256xf32, #tpu.memory_space<vmem>>, vector<8x32xf32>
    tpu.vector_store %arg4[%c0_11, %c0_12], %26 {strides = array<i32>} : memref<8x256xf32, #tpu.memory_space<vmem>>, vector<8x32xf32>,
    %28 = vector.extract_strided_slice %5 {offsets = [8, 0], sizes = [8, 128], strides = [1, 1]} : vector<64x128xf32> to vector<8x128xf32>
    %cst_13 = arith.constant dense<0.000000e+00> : vector<8x128xf32>
    %29 = tpu.matmul %26, %6, %cst_13 {dimension_numbers = #tpu.dot_dimension_numbers<[1], [0], [0], [1], [0, 0, 1, 1], [], []>} : vector<8x32xf32>, vector<32x128xf32>, vector<8x128xf32> -> vector<8x128xf32>
    %30 = arith.addf %28, %29 : vector<8x128xf32>
    %31 = arith.negf %30 : vector<8x128xf32>
    %32 = math.exp %31 : vector<8x128xf32>
    %cst_14 = arith.constant 1.000000e+00 : f32
    %33 = vector.broadcast %cst_14 : f32 to vector<8x128xf32>
    %34 = arith.addf %33, %32 : vector<8x128xf32>
    %35 = arith.divf %33, %34 : vector<8x128xf32>
    %36 = math.tanh %30 : vector<8x128xf32>
    %37 = vector.extract_strided_slice %35 {offsets = [0, 0], sizes = [8, 32], strides = [1, 1]} : vector<8x128xf32> to vector<8x32xf32>
    %38 = vector.extract_strided_slice %35 {offsets = [0, 32], sizes = [8, 32], strides = [1, 1]} : vector<8x128xf32> to vector<8x32xf32>
    %39 = vector.extract_strided_slice %36 {offsets = [0, 64], sizes = [8, 32], strides = [1, 1]} : vector<8x128xf32> to vector<8x32xf32>
    %40 = vector.extract_strided_slice %35 {offsets = [0, 96], sizes = [8, 32], strides = [1, 1]} : vector<8x128xf32> to vector<8x32xf32>
    %41 = arith.mulf %38, %24 : vector<8x32xf32>
    %42 = arith.mulf %37, %39 : vector<8x32xf32>
    %43 = arith.addf %41, %42 : vector<8x32xf32>
    %44 = math.tanh %43 : vector<8x32xf32>
    %45 = arith.mulf %40, %44 : vector<8x32xf32>
    %c0_15 = arith.constant 0 : index
    %c32 = arith.constant 32 : index
    %46 = vector.load %arg4[%c0_15, %c32] : memref<8x256xf32, #tpu.memory_space<vmem>>, vector<8x32xf32>
    tpu.vector_store %arg4[%c0_15, %c32], %45 {strides = array<i32>} : memref<8x256xf32, #tpu.memory_space<vmem>>, vector<8x32xf32>,
    %47 = vector.extract_strided_slice %5 {offsets = [16, 0], sizes = [8, 128], strides = [1, 1]} : vector<64x128xf32> to vector<8x128xf32>
    %cst_16 = arith.constant dense<0.000000e+00> : vector<8x128xf32>
    %48 = tpu.matmul %45, %6, %cst_16 {dimension_numbers = #tpu.dot_dimension_numbers<[1], [0], [0], [1], [0, 0, 1, 1], [], []>} : vector<8x32xf32>, vector<32x128xf32>, vector<8x128xf32> -> vector<8x128xf32>
    %49 = arith.addf %47, %48 : vector<8x128xf32>
    %50 = arith.negf %49 : vector<8x128xf32>
    %51 = math.exp %50 : vector<8x128xf32>
    %cst_17 = arith.constant 1.000000e+00 : f32
    %52 = vector.broadcast %cst_17 : f32 to vector<8x128xf32>
    %53 = arith.addf %52, %51 : vector<8x128xf32>
    %54 = arith.divf %52, %53 : vector<8x128xf32>
    %55 = math.tanh %49 : vector<8x128xf32>
    %56 = vector.extract_strided_slice %54 {offsets = [0, 0], sizes = [8, 32], strides = [1, 1]} : vector<8x128xf32> to vector<8x32xf32>
    %57 = vector.extract_strided_slice %54 {offsets = [0, 32], sizes = [8, 32], strides = [1, 1]} : vector<8x128xf32> to vector<8x32xf32>
    %58 = vector.extract_strided_slice %55 {offsets = [0, 64], sizes = [8, 32], strides = [1, 1]} : vector<8x128xf32> to vector<8x32xf32>
    %59 = vector.extract_strided_slice %54 {offsets = [0, 96], sizes = [8, 32], strides = [1, 1]} : vector<8x128xf32> to vector<8x32xf32>
    %60 = arith.mulf %57, %43 : vector<8x32xf32>
    %61 = arith.mulf %56, %58 : vector<8x32xf32>
    %62 = arith.addf %60, %61 : vector<8x32xf32>
    %63 = math.tanh %62 : vector<8x32xf32>
    %64 = arith.mulf %59, %63 : vector<8x32xf32>
    %c0_18 = arith.constant 0 : index
    %c64 = arith.constant 64 : index
    %65 = vector.load %arg4[%c0_18, %c64] : memref<8x256xf32, #tpu.memory_space<vmem>>, vector<8x32xf32>
    tpu.vector_store %arg4[%c0_18, %c64], %64 {strides = array<i32>} : memref<8x256xf32, #tpu.memory_space<vmem>>, vector<8x32xf32>,
    %66 = vector.extract_strided_slice %5 {offsets = [24, 0], sizes = [8, 128], strides = [1, 1]} : vector<64x128xf32> to vector<8x128xf32>
    %cst_19 = arith.constant dense<0.000000e+00> : vector<8x128xf32>
    %67 = tpu.matmul %64, %6, %cst_19 {dimension_numbers = #tpu.dot_dimension_numbers<[1], [0], [0], [1], [0, 0, 1, 1], [], []>} : vector<8x32xf32>, vector<32x128xf32>, vector<8x128xf32> -> vector<8x128xf32>
    %68 = arith.addf %66, %67 : vector<8x128xf32>
    %69 = arith.negf %68 : vector<8x128xf32>
    %70 = math.exp %69 : vector<8x128xf32>
    %cst_20 = arith.constant 1.000000e+00 : f32
    %71 = vector.broadcast %cst_20 : f32 to vector<8x128xf32>
    %72 = arith.addf %71, %70 : vector<8x128xf32>
    %73 = arith.divf %71, %72 : vector<8x128xf32>
    %74 = math.tanh %68 : vector<8x128xf32>
    %75 = vector.extract_strided_slice %73 {offsets = [0, 0], sizes = [8, 32], strides = [1, 1]} : vector<8x128xf32> to vector<8x32xf32>
    %76 = vector.extract_strided_slice %73 {offsets = [0, 32], sizes = [8, 32], strides = [1, 1]} : vector<8x128xf32> to vector<8x32xf32>
    %77 = vector.extract_strided_slice %74 {offsets = [0, 64], sizes = [8, 32], strides = [1, 1]} : vector<8x128xf32> to vector<8x32xf32>
    %78 = vector.extract_strided_slice %73 {offsets = [0, 96], sizes = [8, 32], strides = [1, 1]} : vector<8x128xf32> to vector<8x32xf32>
    %79 = arith.mulf %76, %62 : vector<8x32xf32>
    %80 = arith.mulf %75, %77 : vector<8x32xf32>
    %81 = arith.addf %79, %80 : vector<8x32xf32>
    %82 = math.tanh %81 : vector<8x32xf32>
    %83 = arith.mulf %78, %82 : vector<8x32xf32>
    %c0_21 = arith.constant 0 : index
    %c96 = arith.constant 96 : index
    %84 = vector.load %arg4[%c0_21, %c96] : memref<8x256xf32, #tpu.memory_space<vmem>>, vector<8x32xf32>
    tpu.vector_store %arg4[%c0_21, %c96], %83 {strides = array<i32>} : memref<8x256xf32, #tpu.memory_space<vmem>>, vector<8x32xf32>,
    %85 = vector.extract_strided_slice %5 {offsets = [32, 0], sizes = [8, 128], strides = [1, 1]} : vector<64x128xf32> to vector<8x128xf32>
    %cst_22 = arith.constant dense<0.000000e+00> : vector<8x128xf32>
    %86 = tpu.matmul %83, %6, %cst_22 {dimension_numbers = #tpu.dot_dimension_numbers<[1], [0], [0], [1], [0, 0, 1, 1], [], []>} : vector<8x32xf32>, vector<32x128xf32>, vector<8x128xf32> -> vector<8x128xf32>
    %87 = arith.addf %85, %86 : vector<8x128xf32>
    %88 = arith.negf %87 : vector<8x128xf32>
    %89 = math.exp %88 : vector<8x128xf32>
    %cst_23 = arith.constant 1.000000e+00 : f32
    %90 = vector.broadcast %cst_23 : f32 to vector<8x128xf32>
    %91 = arith.addf %90, %89 : vector<8x128xf32>
    %92 = arith.divf %90, %91 : vector<8x128xf32>
    %93 = math.tanh %87 : vector<8x128xf32>
    %94 = vector.extract_strided_slice %92 {offsets = [0, 0], sizes = [8, 32], strides = [1, 1]} : vector<8x128xf32> to vector<8x32xf32>
    %95 = vector.extract_strided_slice %92 {offsets = [0, 32], sizes = [8, 32], strides = [1, 1]} : vector<8x128xf32> to vector<8x32xf32>
    %96 = vector.extract_strided_slice %93 {offsets = [0, 64], sizes = [8, 32], strides = [1, 1]} : vector<8x128xf32> to vector<8x32xf32>
    %97 = vector.extract_strided_slice %92 {offsets = [0, 96], sizes = [8, 32], strides = [1, 1]} : vector<8x128xf32> to vector<8x32xf32>
    %98 = arith.mulf %95, %81 : vector<8x32xf32>
    %99 = arith.mulf %94, %96 : vector<8x32xf32>
    %100 = arith.addf %98, %99 : vector<8x32xf32>
    %101 = math.tanh %100 : vector<8x32xf32>
    %102 = arith.mulf %97, %101 : vector<8x32xf32>
    %c0_24 = arith.constant 0 : index
    %c128 = arith.constant 128 : index
    %103 = vector.load %arg4[%c0_24, %c128] : memref<8x256xf32, #tpu.memory_space<vmem>>, vector<8x32xf32>
    tpu.vector_store %arg4[%c0_24, %c128], %102 {strides = array<i32>} : memref<8x256xf32, #tpu.memory_space<vmem>>, vector<8x32xf32>,
    %104 = vector.extract_strided_slice %5 {offsets = [40, 0], sizes = [8, 128], strides = [1, 1]} : vector<64x128xf32> to vector<8x128xf32>
    %cst_25 = arith.constant dense<0.000000e+00> : vector<8x128xf32>
    %105 = tpu.matmul %102, %6, %cst_25 {dimension_numbers = #tpu.dot_dimension_numbers<[1], [0], [0], [1], [0, 0, 1, 1], [], []>} : vector<8x32xf32>, vector<32x128xf32>, vector<8x128xf32> -> vector<8x128xf32>
    %106 = arith.addf %104, %105 : vector<8x128xf32>
    %107 = arith.negf %106 : vector<8x128xf32>
    %108 = math.exp %107 : vector<8x128xf32>
    %cst_26 = arith.constant 1.000000e+00 : f32
    %109 = vector.broadcast %cst_26 : f32 to vector<8x128xf32>
    %110 = arith.addf %109, %108 : vector<8x128xf32>
    %111 = arith.divf %109, %110 : vector<8x128xf32>
    %112 = math.tanh %106 : vector<8x128xf32>
    %113 = vector.extract_strided_slice %111 {offsets = [0, 0], sizes = [8, 32], strides = [1, 1]} : vector<8x128xf32> to vector<8x32xf32>
    %114 = vector.extract_strided_slice %111 {offsets = [0, 32], sizes = [8, 32], strides = [1, 1]} : vector<8x128xf32> to vector<8x32xf32>
    %115 = vector.extract_strided_slice %112 {offsets = [0, 64], sizes = [8, 32], strides = [1, 1]} : vector<8x128xf32> to vector<8x32xf32>
    %116 = vector.extract_strided_slice %111 {offsets = [0, 96], sizes = [8, 32], strides = [1, 1]} : vector<8x128xf32> to vector<8x32xf32>
    %117 = arith.mulf %114, %100 : vector<8x32xf32>
    %118 = arith.mulf %113, %115 : vector<8x32xf32>
    %119 = arith.addf %117, %118 : vector<8x32xf32>
    %120 = math.tanh %119 : vector<8x32xf32>
    %121 = arith.mulf %116, %120 : vector<8x32xf32>
    %c0_27 = arith.constant 0 : index
    %c160 = arith.constant 160 : index
    %122 = vector.load %arg4[%c0_27, %c160] : memref<8x256xf32, #tpu.memory_space<vmem>>, vector<8x32xf32>
    tpu.vector_store %arg4[%c0_27, %c160], %121 {strides = array<i32>} : memref<8x256xf32, #tpu.memory_space<vmem>>, vector<8x32xf32>,
    %123 = vector.extract_strided_slice %5 {offsets = [48, 0], sizes = [8, 128], strides = [1, 1]} : vector<64x128xf32> to vector<8x128xf32>
    %cst_28 = arith.constant dense<0.000000e+00> : vector<8x128xf32>
    %124 = tpu.matmul %121, %6, %cst_28 {dimension_numbers = #tpu.dot_dimension_numbers<[1], [0], [0], [1], [0, 0, 1, 1], [], []>} : vector<8x32xf32>, vector<32x128xf32>, vector<8x128xf32> -> vector<8x128xf32>
    %125 = arith.addf %123, %124 : vector<8x128xf32>
    %126 = arith.negf %125 : vector<8x128xf32>
    %127 = math.exp %126 : vector<8x128xf32>
    %cst_29 = arith.constant 1.000000e+00 : f32
    %128 = vector.broadcast %cst_29 : f32 to vector<8x128xf32>
    %129 = arith.addf %128, %127 : vector<8x128xf32>
    %130 = arith.divf %128, %129 : vector<8x128xf32>
    %131 = math.tanh %125 : vector<8x128xf32>
    %132 = vector.extract_strided_slice %130 {offsets = [0, 0], sizes = [8, 32], strides = [1, 1]} : vector<8x128xf32> to vector<8x32xf32>
    %133 = vector.extract_strided_slice %130 {offsets = [0, 32], sizes = [8, 32], strides = [1, 1]} : vector<8x128xf32> to vector<8x32xf32>
    %134 = vector.extract_strided_slice %131 {offsets = [0, 64], sizes = [8, 32], strides = [1, 1]} : vector<8x128xf32> to vector<8x32xf32>
    %135 = vector.extract_strided_slice %130 {offsets = [0, 96], sizes = [8, 32], strides = [1, 1]} : vector<8x128xf32> to vector<8x32xf32>
    %136 = arith.mulf %133, %119 : vector<8x32xf32>
    %137 = arith.mulf %132, %134 : vector<8x32xf32>
    %138 = arith.addf %136, %137 : vector<8x32xf32>
    %139 = math.tanh %138 : vector<8x32xf32>
    %140 = arith.mulf %135, %139 : vector<8x32xf32>
    %c0_30 = arith.constant 0 : index
    %c192 = arith.constant 192 : index
    %141 = vector.load %arg4[%c0_30, %c192] : memref<8x256xf32, #tpu.memory_space<vmem>>, vector<8x32xf32>
    tpu.vector_store %arg4[%c0_30, %c192], %140 {strides = array<i32>} : memref<8x256xf32, #tpu.memory_space<vmem>>, vector<8x32xf32>,
    %142 = vector.extract_strided_slice %5 {offsets = [56, 0], sizes = [8, 128], strides = [1, 1]} : vector<64x128xf32> to vector<8x128xf32>
    %cst_31 = arith.constant dense<0.000000e+00> : vector<8x128xf32>
    %143 = tpu.matmul %140, %6, %cst_31 {dimension_numbers = #tpu.dot_dimension_numbers<[1], [0], [0], [1], [0, 0, 1, 1], [], []>} : vector<8x32xf32>, vector<32x128xf32>, vector<8x128xf32> -> vector<8x128xf32>
    %144 = arith.addf %142, %143 : vector<8x128xf32>
    %145 = arith.negf %144 : vector<8x128xf32>
    %146 = math.exp %145 : vector<8x128xf32>
    %cst_32 = arith.constant 1.000000e+00 : f32
    %147 = vector.broadcast %cst_32 : f32 to vector<8x128xf32>
    %148 = arith.addf %147, %146 : vector<8x128xf32>
    %149 = arith.divf %147, %148 : vector<8x128xf32>
    %150 = math.tanh %144 : vector<8x128xf32>
    %151 = vector.extract_strided_slice %149 {offsets = [0, 0], sizes = [8, 32], strides = [1, 1]} : vector<8x128xf32> to vector<8x32xf32>
    %152 = vector.extract_strided_slice %149 {offsets = [0, 32], sizes = [8, 32], strides = [1, 1]} : vector<8x128xf32> to vector<8x32xf32>
    %153 = vector.extract_strided_slice %150 {offsets = [0, 64], sizes = [8, 32], strides = [1, 1]} : vector<8x128xf32> to vector<8x32xf32>
    %154 = vector.extract_strided_slice %149 {offsets = [0, 96], sizes = [8, 32], strides = [1, 1]} : vector<8x128xf32> to vector<8x32xf32>
    %155 = arith.mulf %152, %138 : vector<8x32xf32>
    %156 = arith.mulf %151, %153 : vector<8x32xf32>
    %157 = arith.addf %155, %156 : vector<8x32xf32>
    %158 = math.tanh %157 : vector<8x32xf32>
    %159 = arith.mulf %154, %158 : vector<8x32xf32>
    %c0_33 = arith.constant 0 : index
    %c224 = arith.constant 224 : index
    %160 = vector.load %arg4[%c0_33, %c224] : memref<8x256xf32, #tpu.memory_space<vmem>>, vector<8x32xf32>
    tpu.vector_store %arg4[%c0_33, %c224], %159 {strides = array<i32>} : memref<8x256xf32, #tpu.memory_space<vmem>>, vector<8x32xf32>,
    return
  }
}

</mosaic_0001>

<llo_original>
// kernel: tpu_custom_call.1
$region0: #{tpu_custom_call.1}
  #allocation0 [shape = 'u32[]', space=smem, size = 0x4, offset = 0x4, fixed_abs, tag = 'smem constant byte address 0x4 - core index']
  #allocation1 [shape = 'u32[144,128]{1,0:T(1,128)}', space=vmem, size = 0x12000, scoped, tag = 'internal scratch']
  %s0 = inlined_call_operand.vmem [shape: f32[64,16], index: 0, kind: input, shape index: {}]
  %s1 = inlined_call_operand.vmem [shape: f32[16,128], index: 1, kind: input, shape index: {}]
  %s2 = inlined_call_operand.vmem [shape: f32[32,128], index: 2, kind: input, shape index: {}]
  %s3 = inlined_call_operand.vmem [shape: f32[1,128], index: 3, kind: input, shape index: {}]
  %s4 = inlined_call_operand.hbm [shape: f32[8,256], index: 4, kind: output, shape index: {}]
  %s5 = sld [smem:[#allocation0]]
  $region26: #{tpu_custom_call.1} parent=0
    _
  %s7 = ssub.s32 1, %s5
  %s8 = scalar_select 0, %s7, %s5
  $region1: #{tpu_custom_call.1} parent=0
    #allocation2 [shape = 'u8[8192]{0}', space=vmem, size = 0x2000, scoped, tag = 'output window, operand 0, single buffered']
    #allocation3 [shape = 's32[1]{0}', space=sflag, size = 0x4, scoped, tag = 'scoped memory for tpu_custom_call.1']
    %9 = vsyncpa [#allocation3], 0
    // Predicated region
    $region2: #{tpu_custom_call.1} parent=1 // pred_check
      _
    $region3: #{tpu_custom_call.1} parent=1 // pred_check_branch
      %11 = sbr.rel (0) target = $region5
    $region4: #{tpu_custom_call.1} parent=1 // pred_region
      _
    $region5: #{tpu_custom_call.1} parent=1 // pred_fallthru
      _
    // Predicated region
    $region6: #{tpu_custom_call.1} parent=1 // pred_check
      _
    $region7: #{tpu_custom_call.1} parent=1 // pred_check_branch
      %13 = sbr.rel (0) target = $region9
    $region8: #{tpu_custom_call.1} parent=1 // pred_region
      _
    $region9: #{tpu_custom_call.1} parent=1 // pred_fallthru
      _
    // Predicated region
    $region10: #{tpu_custom_call.1} parent=1 // pred_check
      _
    $region11: #{tpu_custom_call.1} parent=1 // pred_check_branch
      %15 = sbr.rel (0) target = $region13
    $region12: #{tpu_custom_call.1} parent=1 // pred_region
      _
    $region13: #{tpu_custom_call.1} parent=1 // pred_fallthru
      _
    // Predicated region
    $region14: #{tpu_custom_call.1} parent=1 // pred_check
      _
    $region15: #{tpu_custom_call.1} parent=1 // pred_check_branch
      %17 = sbr.rel (0) target = $region17
    $region16: #{tpu_custom_call.1} parent=1 // pred_region
      _
    $region17: #{tpu_custom_call.1} parent=1 // pred_fallthru
      _
    %v18 = vld [vmem:[%s0] sm:$0xff]
    %v19 = vld [vmem:[%s0 + $0x8] sm:$0xff]
    %v20 = vld [vmem:[%s0 + $0x10] sm:$0xff]
    %v21 = vld [vmem:[%s0 + $0x18] sm:$0xff]
    %v22 = vld [vmem:[%s0 + $0x20] sm:$0xff]
    %v23 = vld [vmem:[%s0 + $0x28] sm:$0xff]
    %v24 = vld [vmem:[%s0 + $0x30] sm:$0xff]
    %v25 = vld [vmem:[%s0 + $0x38] sm:$0xff]
    %v26 = vld [vmem:[%s1] sm:$0xff]
    %v27 = vld [vmem:[%s1 + $0x8] sm:$0xff]
    %v28 = vld [vmem:[%s3] sm:$0x1]
    %v30 = vlaneseq
    %v31 = vshrl.u32 %v30, 7
    %v32 = vsub.s32 0, %v31
    %v33 = vrot.slane %v28, %v32
    %vm35 = vcmask 130048
    %v37 = vsel %vm35, %v18, 0
    %v40 = vsel %vm35, %v19, 0
    %v43 = vsel %vm35, %v20, 0
    %v46 = vsel %vm35, %v21, 0
    %v49 = vsel %vm35, %v22, 0
    %v52 = vsel %vm35, %v23, 0
    %v55 = vsel %vm35, %v24, 0
    %v58 = vsel %vm35, %v25, 0
    %60 = vmatprep.subr.mxu0 0.0
    %61 = vmatpush1.msra.mxu0 %v26
    %62 = vmatprep.subr.mxu0 0.0
    %63 = vmatpush1.msra.mxu0 %v27
    %64 = vmatprep.subr.mxu0 0.0
    %65 = vmatpush1.msra.mxu0 0.0
    %66 = vmatprep.subr.mxu0 0.0
    %67 = vmatpush1.msra.mxu0 0.0
    %68 = vmatprep.subr.mxu0 0.0
    %69 = vmatpush1.msra.mxu0 0.0
    %70 = vmatprep.subr.mxu0 0.0
    %71 = vmatpush1.msra.mxu0 0.0
    %72 = vmatprep.subr.mxu0 0.0
    %73 = vmatpush1.msra.mxu0 0.0
    %74 = vmatprep.subr.mxu0 0.0
    %75 = vmatpush1.msra.mxu0 0.0
    %76 = vmatprep.subr.mxu0 0.0
    %77 = vmatpush1.msra.mxu0 0.0
    %78 = vmatprep.subr.mxu0 0.0
    %79 = vmatpush1.msra.mxu0 0.0
    %80 = vmatprep.subr.mxu0 0.0
    %81 = vmatpush1.msra.mxu0 0.0
    %82 = vmatprep.subr.mxu0 0.0
    %83 = vmatpush1.msra.mxu0 0.0
    %84 = vmatprep.subr.mxu0 0.0
    %85 = vmatpush1.msra.mxu0 0.0
    %86 = vmatprep.subr.mxu0 0.0
    %87 = vmatpush1.msra.mxu0 0.0
    %88 = vmatprep.subr.mxu0 0.0
    %89 = vmatpush1.msra.mxu0 0.0
    %90 = vmatprep.subr.mxu0 0.0
    %91 = vmatpush1.msra.mxu0 0.0
    %92 = vmatprep.subr.mxu0 0.0
    %93 = vmatpush1.msra.mxu0 0.0
    %94 = vmatprep.subr.mxu0 0.0
    %95 = vmatpush1.msra.mxu0 0.0
    %96 = vmatprep.subr.mxu0 0.0
    %97 = vmatpush1.msra.mxu0 0.0
    %98 = vmatprep.subr.mxu0 0.0
    %99 = vmatpush1.msra.mxu0 0.0
    %100 = vmatprep.subr.mxu0 0.0
    %101 = vmatpush1.msra.mxu0 0.0
    %102 = vmatprep.subr.mxu0 0.0
    %103 = vmatpush1.msra.mxu0 0.0
    %104 = vmatprep.subr.mxu0 0.0
    %105 = vmatpush1.msra.mxu0 0.0
    %106 = vmatprep.subr.mxu0 0.0
    %107 = vmatpush1.msra.mxu0 0.0
    %108 = vmatprep.subr.mxu0 0.0
    %109 = vmatpush1.msra.mxu0 0.0
    %110 = vmatprep.subr.mxu0 0.0
    %111 = vmatpush1.msra.mxu0 0.0
    %112 = vmatprep.subr.mxu0 0.0
    %113 = vmatpush1.msra.mxu0 0.0
    %114 = vmatprep.subr.mxu0 0.0
    %115 = vmatpush1.msra.mxu0 0.0
    %116 = vmatprep.subr.mxu0 0.0
    %117 = vmatpush1.msra.mxu0 0.0
    %118 = vmatprep.subr.mxu0 0.0
    %119 = vmatpush1.msra.mxu0 0.0
    %120 = vmatprep.subr.mxu0 0.0
    %121 = vmatpush1.msra.mxu0 0.0
    %122 = vmatprep.subr.mxu0 0.0
    %123 = vmatpush1.msra.mxu0 0.0
    %124 = vmatprep.mubr.f32.mxu0 0.0
    %125 = vmatmul.mubr.f32.gmra.mrb[0].mxu0 %v37
    %v126 = vpop.f32.mrb[0].mxu0
    %v127 = vadd.f32 %v33, %v126
    %v128 = vpop.f32.mrb[0].mxu0
    %129 = vmatprep.mubr.f32.mxu0 0.0
    %130 = vmatmul.mubr.f32.gmra.mrb[0].mxu0 %v40
    %v131 = vpop.f32.mrb[0].mxu0
    %v132 = vadd.f32 %v33, %v131
    %v133 = vpop.f32.mrb[0].mxu0
    %134 = vmatprep.mubr.f32.mxu0 0.0
    %135 = vmatmul.mubr.f32.gmra.mrb[0].mxu0 %v43
    %v136 = vpop.f32.mrb[0].mxu0
    %v137 = vadd.f32 %v33, %v136
    %v138 = vpop.f32.mrb[0].mxu0
    %139 = vmatprep.mubr.f32.mxu0 0.0
    %140 = vmatmul.mubr.f32.gmra.mrb[0].mxu0 %v46
    %v141 = vpop.f32.mrb[0].mxu0
    %v142 = vadd.f32 %v33, %v141
    %v143 = vpop.f32.mrb[0].mxu0
    %144 = vmatprep.mubr.f32.mxu0 0.0
    %145 = vmatmul.mubr.f32.gmra.mrb[0].mxu0 %v49
    %v146 = vpop.f32.mrb[0].mxu0
    %v147 = vadd.f32 %v33, %v146
    %v148 = vpop.f32.mrb[0].mxu0
    %149 = vmatprep.mubr.f32.mxu0 0.0
    %150 = vmatmul.mubr.f32.gmra.mrb[0].mxu0 %v52
    %v151 = vpop.f32.mrb[0].mxu0
    %v152 = vadd.f32 %v33, %v151
    %v153 = vpop.f32.mrb[0].mxu0
    %154 = vmatprep.mubr.f32.mxu0 0.0
    %155 = vmatmul.mubr.f32.gmra.mrb[0].mxu0 %v55
    %v156 = vpop.f32.mrb[0].mxu0
    %v157 = vadd.f32 %v33, %v156
    %v158 = vpop.f32.mrb[0].mxu0
    %159 = vmatprep.mubr.f32.mxu0 0.0
    %160 = vmatmul.mubr.f32.gmra.mrb[0].mxu0 %v58
    %v161 = vpop.f32.mrb[0].mxu0
    %v162 = vadd.f32 %v33, %v161
    %v163 = vpop.f32.mrb[0].mxu0
    %164 = vdwg.mxu0
    %v165 = vld [vmem:[%s2] sm:$0xff]
    %v166 = vld [vmem:[%s2 + $0x8] sm:$0xff]
    %v167 = vld [vmem:[%s2 + $0x10] sm:$0xff]
    %v168 = vld [vmem:[%s2 + $0x18] sm:$0xff]
    %vm169 = vcmask 261120
    %v171 = vsel %vm169, 0.0, 0
    %173 = vmatprep.subr.mxu0 0.0
    %174 = vmatpush1.msra.mxu0 %v165
    %175 = vmatprep.subr.mxu0 0.0
    %176 = vmatpush1.msra.mxu0 %v166
    %177 = vmatprep.subr.mxu0 0.0
    %178 = vmatpush1.msra.mxu0 %v167
    %179 = vmatprep.subr.mxu0 0.0
    %180 = vmatpush1.msra.mxu0 %v168
    %181 = vmatprep.subr.mxu0 0.0
    %182 = vmatpush1.msra.mxu0 0.0
    %183 = vmatprep.subr.mxu0 0.0
    %184 = vmatpush1.msra.mxu0 0.0
    %185 = vmatprep.subr.mxu0 0.0
    %186 = vmatpush1.msra.mxu0 0.0
    %187 = vmatprep.subr.mxu0 0.0
    %188 = vmatpush1.msra.mxu0 0.0
    %189 = vmatprep.subr.mxu0 0.0
    %190 = vmatpush1.msra.mxu0 0.0
    %191 = vmatprep.subr.mxu0 0.0
    %192 = vmatpush1.msra.mxu0 0.0
    %193 = vmatprep.subr.mxu0 0.0
    %194 = vmatpush1.msra.mxu0 0.0
    %195 = vmatprep.subr.mxu0 0.0
    %196 = vmatpush1.msra.mxu0 0.0
    %197 = vmatprep.subr.mxu0 0.0
    %198 = vmatpush1.msra.mxu0 0.0
    %199 = vmatprep.subr.mxu0 0.0
    %200 = vmatpush1.msra.mxu0 0.0
    %201 = vmatprep.subr.mxu0 0.0
    %202 = vmatpush1.msra.mxu0 0.0
    %203 = vmatprep.subr.mxu0 0.0
    %204 = vmatpush1.msra.mxu0 0.0
    %205 = vmatprep.subr.mxu0 0.0
    %206 = vmatpush1.msra.mxu0 0.0
    %207 = vmatprep.subr.mxu0 0.0
    %208 = vmatpush1.msra.mxu0 0.0
    %209 = vmatprep.subr.mxu0 0.0
    %210 = vmatpush1.msra.mxu0 0.0
    %211 = vmatprep.subr.mxu0 0.0
    %212 = vmatpush1.msra.mxu0 0.0
    %213 = vmatprep.subr.mxu0 0.0
    %214 = vmatpush1.msra.mxu0 0.0
    %215 = vmatprep.subr.mxu0 0.0
    %216 = vmatpush1.msra.mxu0 0.0
    %217 = vmatprep.subr.mxu0 0.0
    %218 = vmatpush1.msra.mxu0 0.0
    %219 = vmatprep.subr.mxu0 0.0
    %220 = vmatpush1.msra.mxu0 0.0
    %221 = vmatprep.subr.mxu0 0.0
    %222 = vmatpush1.msra.mxu0 0.0
    %223 = vmatprep.subr.mxu0 0.0
    %224 = vmatpush1.msra.mxu0 0.0
    %225 = vmatprep.subr.mxu0 0.0
    %226 = vmatpush1.msra.mxu0 0.0
    %227 = vmatprep.subr.mxu0 0.0
    %228 = vmatpush1.msra.mxu0 0.0
    %229 = vmatprep.subr.mxu0 0.0
    %230 = vmatpush1.msra.mxu0 0.0
    %231 = vmatprep.subr.mxu0 0.0
    %232 = vmatpush1.msra.mxu0 0.0
    %233 = vmatprep.subr.mxu0 0.0
    %234 = vmatpush1.msra.mxu0 0.0
    %235 = vmatprep.subr.mxu0 0.0
    %236 = vmatpush1.msra.mxu0 0.0
    %237 = vmatprep.mubr.f32.mxu0 0.0
    %238 = vmatmul.mubr.f32.gmra.mrb[0].mxu0 %v171
    %v239 = vpop.f32.mrb[0].mxu0
    %v240 = vadd.f32 0.0, %v239
    %v241 = vpop.f32.mrb[0].mxu0
    %242 = vdwg.mxu0
    %v243 = vadd.f32 %v127, %v240
    %v244 = vxor.u32 %v243, 2147483648
    %v245 = vmul.f32 %v244, 1.442695
    %v246 = vpow.pop %v245
    %v247 = vadd.f32 %v246, 1.0
    %v248 = vrcp.pop %v247
    %v249 = vmul.f32 1.0, %v248
    %v250 = vtanh.pop %v243
    %v251 = vmul.f32 %v249, 0.0
    %253 = vrot.lane.b32.xlu0 %v250, 64
    %v254 = vpop.permute.xlu0 %253
    %v256 = vmul.f32 %v249, %v254
    %258 = vrot.lane.b32.xlu0 %v256, 32
    %v259 = vpop.permute.xlu0 %258
    %v261 = vadd.f32 %v251, %v259
    %v262 = vtanh.pop %v261
    %264 = vrot.lane.b32.xlu0 %v262, 64
    %v265 = vpop.permute.xlu0 %264
    %v267 = vmul.f32 %v249, %v265
    %269 = vrot.lane.b32.xlu0 %v267, 32
    %v270 = vpop.permute.xlu0 %269
    %272 = vst.msk [vmem:[#allocation2] sm:$0xff] %vm169, %v270
    %v273 = vsel %vm169, %v270, 0
    %275 = vmatprep.subr.mxu0 0.0
    %276 = vmatpush1.msra.mxu0 %v165
    %277 = vmatprep.subr.mxu0 0.0
    %278 = vmatpush1.msra.mxu0 %v166
    %279 = vmatprep.subr.mxu0 0.0
    %280 = vmatpush1.msra.mxu0 %v167
    %281 = vmatprep.subr.mxu0 0.0
    %282 = vmatpush1.msra.mxu0 %v168
    %283 = vmatprep.subr.mxu0 0.0
    %284 = vmatpush1.msra.mxu0 0.0
    %285 = vmatprep.subr.mxu0 0.0
    %286 = vmatpush1.msra.mxu0 0.0
    %287 = vmatprep.subr.mxu0 0.0
    %288 = vmatpush1.msra.mxu0 0.0
    %289 = vmatprep.subr.mxu0 0.0
    %290 = vmatpush1.msra.mxu0 0.0
    %291 = vmatprep.subr.mxu0 0.0
    %292 = vmatpush1.msra.mxu0 0.0
    %293 = vmatprep.subr.mxu0 0.0
    %294 = vmatpush1.msra.mxu0 0.0
    %295 = vmatprep.subr.mxu0 0.0
    %296 = vmatpush1.msra.mxu0 0.0
    %297 = vmatprep.subr.mxu0 0.0
    %298 = vmatpush1.msra.mxu0 0.0
    %299 = vmatprep.subr.mxu0 0.0
    %300 = vmatpush1.msra.mxu0 0.0
    %301 = vmatprep.subr.mxu0 0.0
    %302 = vmatpush1.msra.mxu0 0.0
    %303 = vmatprep.subr.mxu0 0.0
    %304 = vmatpush1.msra.mxu0 0.0
    %305 = vmatprep.subr.mxu0 0.0
    %306 = vmatpush1.msra.mxu0 0.0
    %307 = vmatprep.subr.mxu0 0.0
    %308 = vmatpush1.msra.mxu0 0.0
    %309 = vmatprep.subr.mxu0 0.0
    %310 = vmatpush1.msra.mxu0 0.0
    %311 = vmatprep.subr.mxu0 0.0
    %312 = vmatpush1.msra.mxu0 0.0
    %313 = vmatprep.subr.mxu0 0.0
    %314 = vmatpush1.msra.mxu0 0.0
    %315 = vmatprep.subr.mxu0 0.0
    %316 = vmatpush1.msra.mxu0 0.0
    %317 = vmatprep.subr.mxu0 0.0
    %318 = vmatpush1.msra.mxu0 0.0
    %319 = vmatprep.subr.mxu0 0.0
    %320 = vmatpush1.msra.mxu0 0.0
    %321 = vmatprep.subr.mxu0 0.0
    %322 = vmatpush1.msra.mxu0 0.0
    %323 = vmatprep.subr.mxu0 0.0
    %324 = vmatpush1.msra.mxu0 0.0
    %325 = vmatprep.subr.mxu0 0.0
    %326 = vmatpush1.msra.mxu0 0.0
    %327 = vmatprep.subr.mxu0 0.0
    %328 = vmatpush1.msra.mxu0 0.0
    %329 = vmatprep.subr.mxu0 0.0
    %330 = vmatpush1.msra.mxu0 0.0
    %331 = vmatprep.subr.mxu0 0.0
    %332 = vmatpush1.msra.mxu0 0.0
    %333 = vmatprep.subr.mxu0 0.0
    %334 = vmatpush1.msra.mxu0 0.0
    %335 = vmatprep.subr.mxu0 0.0
    %336 = vmatpush1.msra.mxu0 0.0
    %337 = vmatprep.subr.mxu0 0.0
    %338 = vmatpush1.msra.mxu0 0.0
    %339 = vmatprep.mubr.f32.mxu0 0.0
    %340 = vmatmul.mubr.f32.gmra.mrb[0].mxu0 %v273
    %v341 = vpop.f32.mrb[0].mxu0
    %v342 = vadd.f32 0.0, %v341
    %v343 = vpop.f32.mrb[0].mxu0
    %344 = vdwg.mxu0
    %v345 = vadd.f32 %v132, %v342
    %v346 = vxor.u32 %v345, 2147483648
    %v347 = vmul.f32 %v346, 1.442695
    %v348 = vpow.pop %v347
    %v349 = vadd.f32 %v348, 1.0
    %v350 = vrcp.pop %v349
    %v351 = vmul.f32 1.0, %v350
    %v352 = vtanh.pop %v345
    %v353 = vmul.f32 %v351, %v261
    %355 = vrot.lane.b32.xlu0 %v352, 64
    %v356 = vpop.permute.xlu0 %355
    %v358 = vmul.f32 %v351, %v356
    %360 = vrot.lane.b32.xlu0 %v358, 32
    %v361 = vpop.permute.xlu0 %360
    %v363 = vadd.f32 %v353, %v361
    %v364 = vtanh.pop %v363
    %366 = vrot.lane.b32.xlu0 %v364, 64
    %v367 = vpop.permute.xlu0 %366
    %v369 = vmul.f32 %v351, %v367
    %371 = vrot.lane.b32.xlu0 %v369, 64
    %v372 = vpop.permute.xlu0 %371
    %vm374 = vcmask 523520
    %375 = vst.msk [vmem:[#allocation2] sm:$0xff] %vm374, %v372
    %376 = vrot.lane.b32.xlu0 %v369, 32
    %v377 = vpop.permute.xlu0 %376
    %v378 = vsel %vm169, %v377, 0
    %380 = vmatprep.subr.mxu0 0.0
    %381 = vmatpush1.msra.mxu0 %v165
    %382 = vmatprep.subr.mxu0 0.0
    %383 = vmatpush1.msra.mxu0 %v166
    %384 = vmatprep.subr.mxu0 0.0
    %385 = vmatpush1.msra.mxu0 %v167
    %386 = vmatprep.subr.mxu0 0.0
    %387 = vmatpush1.msra.mxu0 %v168
    %388 = vmatprep.subr.mxu0 0.0
    %389 = vmatpush1.msra.mxu0 0.0
    %390 = vmatprep.subr.mxu0 0.0
    %391 = vmatpush1.msra.mxu0 0.0
    %392 = vmatprep.subr.mxu0 0.0
    %393 = vmatpush1.msra.mxu0 0.0
    %394 = vmatprep.subr.mxu0 0.0
    %395 = vmatpush1.msra.mxu0 0.0
    %396 = vmatprep.subr.mxu0 0.0
    %397 = vmatpush1.msra.mxu0 0.0
    %398 = vmatprep.subr.mxu0 0.0
    %399 = vmatpush1.msra.mxu0 0.0
    %400 = vmatprep.subr.mxu0 0.0
    %401 = vmatpush1.msra.mxu0 0.0
    %402 = vmatprep.subr.mxu0 0.0
    %403 = vmatpush1.msra.mxu0 0.0
    %404 = vmatprep.subr.mxu0 0.0
    %405 = vmatpush1.msra.mxu0 0.0
    %406 = vmatprep.subr.mxu0 0.0
    %407 = vmatpush1.msra.mxu0 0.0
    %408 = vmatprep.subr.mxu0 0.0
    %409 = vmatpush1.msra.mxu0 0.0
    %410 = vmatprep.subr.mxu0 0.0
    %411 = vmatpush1.msra.mxu0 0.0
    %412 = vmatprep.subr.mxu0 0.0
    %413 = vmatpush1.msra.mxu0 0.0
    %414 = vmatprep.subr.mxu0 0.0
    %415 = vmatpush1.msra.mxu0 0.0
    %416 = vmatprep.subr.mxu0 0.0
    %417 = vmatpush1.msra.mxu0 0.0
    %418 = vmatprep.subr.mxu0 0.0
    %419 = vmatpush1.msra.mxu0 0.0
    %420 = vmatprep.subr.mxu0 0.0
    %421 = vmatpush1.msra.mxu0 0.0
    %422 = vmatprep.subr.mxu0 0.0
    %423 = vmatpush1.msra.mxu0 0.0
    %424 = vmatprep.subr.mxu0 0.0
    %425 = vmatpush1.msra.mxu0 0.0
    %426 = vmatprep.subr.mxu0 0.0
    %427 = vmatpush1.msra.mxu0 0.0
    %428 = vmatprep.subr.mxu0 0.0
    %429 = vmatpush1.msra.mxu0 0.0
    %430 = vmatprep.subr.mxu0 0.0
    %431 = vmatpush1.msra.mxu0 0.0
    %432 = vmatprep.subr.mxu0 0.0
    %433 = vmatpush1.msra.mxu0 0.0
    %434 = vmatprep.subr.mxu0 0.0
    %435 = vmatpush1.msra.mxu0 0.0
    %436 = vmatprep.subr.mxu0 0.0
    %437 = vmatpush1.msra.mxu0 0.0
    %438 = vmatprep.subr.mxu0 0.0
    %439 = vmatpush1.msra.mxu0 0.0
    %440 = vmatprep.subr.mxu0 0.0
    %441 = vmatpush1.msra.mxu0 0.0
    %442 = vmatprep.subr.mxu0 0.0
    %443 = vmatpush1.msra.mxu0 0.0
    %444 = vmatprep.mubr.f32.mxu0 0.0
    %445 = vmatmul.mubr.f32.gmra.mrb[0].mxu0 %v378
    %v446 = vpop.f32.mrb[0].mxu0
    %v447 = vadd.f32 0.0, %v446
    %v448 = vpop.f32.mrb[0].mxu0
    %449 = vdwg.mxu0
    %v450 = vadd.f32 %v137, %v447
    %v451 = vxor.u32 %v450, 2147483648
    %v452 = vmul.f32 %v451, 1.442695
    %v453 = vpow.pop %v452
    %v454 = vadd.f32 %v453, 1.0
    %v455 = vrcp.pop %v454
    %v456 = vmul.f32 1.0, %v455
    %v457 = vtanh.pop %v450
    %v458 = vmul.f32 %v456, %v363
    %460 = vrot.lane.b32.xlu0 %v457, 64
    %v461 = vpop.permute.xlu0 %460
    %v463 = vmul.f32 %v456, %v461
    %465 = vrot.lane.b32.xlu0 %v463, 32
    %v466 = vpop.permute.xlu0 %465
    %v468 = vadd.f32 %v458, %v466
    %v469 = vtanh.pop %v468
    %471 = vrot.lane.b32.xlu0 %v469, 64
    %v472 = vpop.permute.xlu0 %471
    %v474 = vmul.f32 %v456, %v472
    %476 = vrot.lane.b32.xlu0 %v474, 96
    %v477 = vpop.permute.xlu0 %476
    %vm479 = vcmask 785920
    %480 = vst.msk [vmem:[#allocation2] sm:$0xff] %vm479, %v477
    %481 = vrot.lane.b32.xlu0 %v474, 32
    %v482 = vpop.permute.xlu0 %481
    %v483 = vsel %vm169, %v482, 0
    %485 = vmatprep.subr.mxu0 0.0
    %486 = vmatpush1.msra.mxu0 %v165
    %487 = vmatprep.subr.mxu0 0.0
    %488 = vmatpush1.msra.mxu0 %v166
    %489 = vmatprep.subr.mxu0 0.0
    %490 = vmatpush1.msra.mxu0 %v167
    %491 = vmatprep.subr.mxu0 0.0
    %492 = vmatpush1.msra.mxu0 %v168
    %493 = vmatprep.subr.mxu0 0.0
    %494 = vmatpush1.msra.mxu0 0.0
    %495 = vmatprep.subr.mxu0 0.0
    %496 = vmatpush1.msra.mxu0 0.0
    %497 = vmatprep.subr.mxu0 0.0
    %498 = vmatpush1.msra.mxu0 0.0
    %499 = vmatprep.subr.mxu0 0.0
    %500 = vmatpush1.msra.mxu0 0.0
    %501 = vmatprep.subr.mxu0 0.0
    %502 = vmatpush1.msra.mxu0 0.0
    %503 = vmatprep.subr.mxu0 0.0
    %504 = vmatpush1.msra.mxu0 0.0
    %505 = vmatprep.subr.mxu0 0.0
    %506 = vmatpush1.msra.mxu0 0.0
    %507 = vmatprep.subr.mxu0 0.0
    %508 = vmatpush1.msra.mxu0 0.0
    %509 = vmatprep.subr.mxu0 0.0
    %510 = vmatpush1.msra.mxu0 0.0
    %511 = vmatprep.subr.mxu0 0.0
    %512 = vmatpush1.msra.mxu0 0.0
    %513 = vmatprep.subr.mxu0 0.0
    %514 = vmatpush1.msra.mxu0 0.0
    %515 = vmatprep.subr.mxu0 0.0
    %516 = vmatpush1.msra.mxu0 0.0
    %517 = vmatprep.subr.mxu0 0.0
    %518 = vmatpush1.msra.mxu0 0.0
    %519 = vmatprep.subr.mxu0 0.0
    %520 = vmatpush1.msra.mxu0 0.0
    %521 = vmatprep.subr.mxu0 0.0
    %522 = vmatpush1.msra.mxu0 0.0
    %523 = vmatprep.subr.mxu0 0.0
    %524 = vmatpush1.msra.mxu0 0.0
    %525 = vmatprep.subr.mxu0 0.0
    %526 = vmatpush1.msra.mxu0 0.0
    %527 = vmatprep.subr.mxu0 0.0
    %528 = vmatpush1.msra.mxu0 0.0
    %529 = vmatprep.subr.mxu0 0.0
    %530 = vmatpush1.msra.mxu0 0.0
    %531 = vmatprep.subr.mxu0 0.0
    %532 = vmatpush1.msra.mxu0 0.0
    %533 = vmatprep.subr.mxu0 0.0
    %534 = vmatpush1.msra.mxu0 0.0
    %535 = vmatprep.subr.mxu0 0.0
    %536 = vmatpush1.msra.mxu0 0.0
    %537 = vmatprep.subr.mxu0 0.0
    %538 = vmatpush1.msra.mxu0 0.0
    %539 = vmatprep.subr.mxu0 0.0
    %540 = vmatpush1.msra.mxu0 0.0
    %541 = vmatprep.subr.mxu0 0.0
    %542 = vmatpush1.msra.mxu0 0.0
    %543 = vmatprep.subr.mxu0 0.0
    %544 = vmatpush1.msra.mxu0 0.0
    %545 = vmatprep.subr.mxu0 0.0
    %546 = vmatpush1.msra.mxu0 0.0
    %547 = vmatprep.subr.mxu0 0.0
    %548 = vmatpush1.msra.mxu0 0.0
    %549 = vmatprep.mubr.f32.mxu0 0.0
    %550 = vmatmul.mubr.f32.gmra.mrb[0].mxu0 %v483
    %v551 = vpop.f32.mrb[0].mxu0
    %v552 = vadd.f32 0.0, %v551
    %v553 = vpop.f32.mrb[0].mxu0
    %554 = vdwg.mxu0
    %v555 = vadd.f32 %v142, %v552
    %v556 = vxor.u32 %v555, 2147483648
    %v557 = vmul.f32 %v556, 1.442695
    %v558 = vpow.pop %v557
    %v559 = vadd.f32 %v558, 1.0
    %v560 = vrcp.pop %v559
    %v561 = vmul.f32 1.0, %v560
    %v562 = vtanh.pop %v555
    %v563 = vmul.f32 %v561, %v468
    %565 = vrot.lane.b32.xlu0 %v562, 64
    %v566 = vpop.permute.xlu0 %565
    %v568 = vmul.f32 %v561, %v566
    %570 = vrot.lane.b32.xlu0 %v568, 32
    %v571 = vpop.permute.xlu0 %570
    %v573 = vadd.f32 %v563, %v571
    %v574 = vtanh.pop %v573
    %576 = vrot.lane.b32.xlu0 %v574, 64
    %v577 = vpop.permute.xlu0 %576
    %v579 = vmul.f32 %v561, %v577
    %vm580 = vcmask 1048320
    %581 = vst.msk [vmem:[#allocation2] sm:$0xff] %vm580, %v579
    %583 = vrot.lane.b32.xlu0 %v579, 32
    %v584 = vpop.permute.xlu0 %583
    %v585 = vsel %vm169, %v584, 0
    %587 = vmatprep.subr.mxu0 0.0
    %588 = vmatpush1.msra.mxu0 %v165
    %589 = vmatprep.subr.mxu0 0.0
    %590 = vmatpush1.msra.mxu0 %v166
    %591 = vmatprep.subr.mxu0 0.0
    %592 = vmatpush1.msra.mxu0 %v167
    %593 = vmatprep.subr.mxu0 0.0
    %594 = vmatpush1.msra.mxu0 %v168
    %595 = vmatprep.subr.mxu0 0.0
    %596 = vmatpush1.msra.mxu0 0.0
    %597 = vmatprep.subr.mxu0 0.0
    %598 = vmatpush1.msra.mxu0 0.0
    %599 = vmatprep.subr.mxu0 0.0
    %600 = vmatpush1.msra.mxu0 0.0
    %601 = vmatprep.subr.mxu0 0.0
    %602 = vmatpush1.msra.mxu0 0.0
    %603 = vmatprep.subr.mxu0 0.0
    %604 = vmatpush1.msra.mxu0 0.0
    %605 = vmatprep.subr.mxu0 0.0
    %606 = vmatpush1.msra.mxu0 0.0
    %607 = vmatprep.subr.mxu0 0.0
    %608 = vmatpush1.msra.mxu0 0.0
    %609 = vmatprep.subr.mxu0 0.0
    %610 = vmatpush1.msra.mxu0 0.0
    %611 = vmatprep.subr.mxu0 0.0
    %612 = vmatpush1.msra.mxu0 0.0
    %613 = vmatprep.subr.mxu0 0.0
    %614 = vmatpush1.msra.mxu0 0.0
    %615 = vmatprep.subr.mxu0 0.0
    %616 = vmatpush1.msra.mxu0 0.0
    %617 = vmatprep.subr.mxu0 0.0
    %618 = vmatpush1.msra.mxu0 0.0
    %619 = vmatprep.subr.mxu0 0.0
    %620 = vmatpush1.msra.mxu0 0.0
    %621 = vmatprep.subr.mxu0 0.0
    %622 = vmatpush1.msra.mxu0 0.0
    %623 = vmatprep.subr.mxu0 0.0
    %624 = vmatpush1.msra.mxu0 0.0
    %625 = vmatprep.subr.mxu0 0.0
    %626 = vmatpush1.msra.mxu0 0.0
    %627 = vmatprep.subr.mxu0 0.0
    %628 = vmatpush1.msra.mxu0 0.0
    %629 = vmatprep.subr.mxu0 0.0
    %630 = vmatpush1.msra.mxu0 0.0
    %631 = vmatprep.subr.mxu0 0.0
    %632 = vmatpush1.msra.mxu0 0.0
    %633 = vmatprep.subr.mxu0 0.0
    %634 = vmatpush1.msra.mxu0 0.0
    %635 = vmatprep.subr.mxu0 0.0
    %636 = vmatpush1.msra.mxu0 0.0
    %637 = vmatprep.subr.mxu0 0.0
    %638 = vmatpush1.msra.mxu0 0.0
    %639 = vmatprep.subr.mxu0 0.0
    %640 = vmatpush1.msra.mxu0 0.0
    %641 = vmatprep.subr.mxu0 0.0
    %642 = vmatpush1.msra.mxu0 0.0
    %643 = vmatprep.subr.mxu0 0.0
    %644 = vmatpush1.msra.mxu0 0.0
    %645 = vmatprep.subr.mxu0 0.0
    %646 = vmatpush1.msra.mxu0 0.0
    %647 = vmatprep.subr.mxu0 0.0
    %648 = vmatpush1.msra.mxu0 0.0
    %649 = vmatprep.subr.mxu0 0.0
    %650 = vmatpush1.msra.mxu0 0.0
    %651 = vmatprep.mubr.f32.mxu0 0.0
    %652 = vmatmul.mubr.f32.gmra.mrb[0].mxu0 %v585
    %v653 = vpop.f32.mrb[0].mxu0
    %v654 = vadd.f32 0.0, %v653
    %v655 = vpop.f32.mrb[0].mxu0
    %656 = vdwg.mxu0
    %v657 = vadd.f32 %v147, %v654
    %v658 = vxor.u32 %v657, 2147483648
    %v659 = vmul.f32 %v658, 1.442695
    %v660 = vpow.pop %v659
    %v661 = vadd.f32 %v660, 1.0
    %v662 = vrcp.pop %v661
    %v663 = vmul.f32 1.0, %v662
    %v664 = vtanh.pop %v657
    %v665 = vmul.f32 %v663, %v573
    %667 = vrot.lane.b32.xlu0 %v664, 64
    %v668 = vpop.permute.xlu0 %667
    %v670 = vmul.f32 %v663, %v668
    %672 = vrot.lane.b32.xlu0 %v670, 32
    %v673 = vpop.permute.xlu0 %672
    %v675 = vadd.f32 %v665, %v673
    %v676 = vtanh.pop %v675
    %678 = vrot.lane.b32.xlu0 %v676, 64
    %v679 = vpop.permute.xlu0 %678
    %v681 = vmul.f32 %v663, %v679
    %683 = vrot.lane.b32.xlu0 %v681, 32
    %v684 = vpop.permute.xlu0 %683
    %686 = vst.msk [vmem:[#allocation2 + $0x8] sm:$0xff] %vm169, %v684
    %v687 = vsel %vm169, %v684, 0
    %689 = vmatprep.subr.mxu0 0.0
    %690 = vmatpush1.msra.mxu0 %v165
    %691 = vmatprep.subr.mxu0 0.0
    %692 = vmatpush1.msra.mxu0 %v166
    %693 = vmatprep.subr.mxu0 0.0
    %694 = vmatpush1.msra.mxu0 %v167
    %695 = vmatprep.subr.mxu0 0.0
    %696 = vmatpush1.msra.mxu0 %v168
    %697 = vmatprep.subr.mxu0 0.0
    %698 = vmatpush1.msra.mxu0 0.0
    %699 = vmatprep.subr.mxu0 0.0
    %700 = vmatpush1.msra.mxu0 0.0
    %701 = vmatprep.subr.mxu0 0.0
    %702 = vmatpush1.msra.mxu0 0.0
    %703 = vmatprep.subr.mxu0 0.0
    %704 = vmatpush1.msra.mxu0 0.0
    %705 = vmatprep.subr.mxu0 0.0
    %706 = vmatpush1.msra.mxu0 0.0
    %707 = vmatprep.subr.mxu0 0.0
    %708 = vmatpush1.msra.mxu0 0.0
    %709 = vmatprep.subr.mxu0 0.0
    %710 = vmatpush1.msra.mxu0 0.0
    %711 = vmatprep.subr.mxu0 0.0
    %712 = vmatpush1.msra.mxu0 0.0
    %713 = vmatprep.subr.mxu0 0.0
    %714 = vmatpush1.msra.mxu0 0.0
    %715 = vmatprep.subr.mxu0 0.0
    %716 = vmatpush1.msra.mxu0 0.0
    %717 = vmatprep.subr.mxu0 0.0
    %718 = vmatpush1.msra.mxu0 0.0
    %719 = vmatprep.subr.mxu0 0.0
    %720 = vmatpush1.msra.mxu0 0.0
    %721 = vmatprep.subr.mxu0 0.0
    %722 = vmatpush1.msra.mxu0 0.0
    %723 = vmatprep.subr.mxu0 0.0
    %724 = vmatpush1.msra.mxu0 0.0
    %725 = vmatprep.subr.mxu0 0.0
    %726 = vmatpush1.msra.mxu0 0.0
    %727 = vmatprep.subr.mxu0 0.0
    %728 = vmatpush1.msra.mxu0 0.0
    %729 = vmatprep.subr.mxu0 0.0
    %730 = vmatpush1.msra.mxu0 0.0
    %731 = vmatprep.subr.mxu0 0.0
    %732 = vmatpush1.msra.mxu0 0.0
    %733 = vmatprep.subr.mxu0 0.0
    %734 = vmatpush1.msra.mxu0 0.0
    %735 = vmatprep.subr.mxu0 0.0
    %736 = vmatpush1.msra.mxu0 0.0
    %737 = vmatprep.subr.mxu0 0.0
    %738 = vmatpush1.msra.mxu0 0.0
    %739 = vmatprep.subr.mxu0 0.0
    %740 = vmatpush1.msra.mxu0 0.0
    %741 = vmatprep.subr.mxu0 0.0
    %742 = vmatpush1.msra.mxu0 0.0
    %743 = vmatprep.subr.mxu0 0.0
    %744 = vmatpush1.msra.mxu0 0.0
    %745 = vmatprep.subr.mxu0 0.0
    %746 = vmatpush1.msra.mxu0 0.0
    %747 = vmatprep.subr.mxu0 0.0
    %748 = vmatpush1.msra.mxu0 0.0
    %749 = vmatprep.subr.mxu0 0.0
    %750 = vmatpush1.msra.mxu0 0.0
    %751 = vmatprep.subr.mxu0 0.0
    %752 = vmatpush1.msra.mxu0 0.0
    %753 = vmatprep.mubr.f32.mxu0 0.0
    %754 = vmatmul.mubr.f32.gmra.mrb[0].mxu0 %v687
    %v755 = vpop.f32.mrb[0].mxu0
    %v756 = vadd.f32 0.0, %v755
    %v757 = vpop.f32.mrb[0].mxu0
    %758 = vdwg.mxu0
    %v759 = vadd.f32 %v152, %v756
    %v760 = vxor.u32 %v759, 2147483648
    %v761 = vmul.f32 %v760, 1.442695
    %v762 = vpow.pop %v761
    %v763 = vadd.f32 %v762, 1.0
    %v764 = vrcp.pop %v763
    %v765 = vmul.f32 1.0, %v764
    %v766 = vtanh.pop %v759
    %v767 = vmul.f32 %v765, %v675
    %769 = vrot.lane.b32.xlu0 %v766, 64
    %v770 = vpop.permute.xlu0 %769
    %v772 = vmul.f32 %v765, %v770
    %774 = vrot.lane.b32.xlu0 %v772, 32
    %v775 = vpop.permute.xlu0 %774
    %v777 = vadd.f32 %v767, %v775
    %v778 = vtanh.pop %v777
    %780 = vrot.lane.b32.xlu0 %v778, 64
    %v781 = vpop.permute.xlu0 %780
    %v783 = vmul.f32 %v765, %v781
    %785 = vrot.lane.b32.xlu0 %v783, 64
    %v786 = vpop.permute.xlu0 %785
    %788 = vst.msk [vmem:[#allocation2 + $0x8] sm:$0xff] %vm374, %v786
    %789 = vrot.lane.b32.xlu0 %v783, 32
    %v790 = vpop.permute.xlu0 %789
    %v791 = vsel %vm169, %v790, 0
    %793 = vmatprep.subr.mxu0 0.0
    %794 = vmatpush1.msra.mxu0 %v165
    %795 = vmatprep.subr.mxu0 0.0
    %796 = vmatpush1.msra.mxu0 %v166
    %797 = vmatprep.subr.mxu0 0.0
    %798 = vmatpush1.msra.mxu0 %v167
    %799 = vmatprep.subr.mxu0 0.0
    %800 = vmatpush1.msra.mxu0 %v168
    %801 = vmatprep.subr.mxu0 0.0
    %802 = vmatpush1.msra.mxu0 0.0
    %803 = vmatprep.subr.mxu0 0.0
    %804 = vmatpush1.msra.mxu0 0.0
    %805 = vmatprep.subr.mxu0 0.0
    %806 = vmatpush1.msra.mxu0 0.0
    %807 = vmatprep.subr.mxu0 0.0
    %808 = vmatpush1.msra.mxu0 0.0
    %809 = vmatprep.subr.mxu0 0.0
    %810 = vmatpush1.msra.mxu0 0.0
    %811 = vmatprep.subr.mxu0 0.0
    %812 = vmatpush1.msra.mxu0 0.0
    %813 = vmatprep.subr.mxu0 0.0
    %814 = vmatpush1.msra.mxu0 0.0
    %815 = vmatprep.subr.mxu0 0.0
    %816 = vmatpush1.msra.mxu0 0.0
    %817 = vmatprep.subr.mxu0 0.0
    %818 = vmatpush1.msra.mxu0 0.0
    %819 = vmatprep.subr.mxu0 0.0
    %820 = vmatpush1.msra.mxu0 0.0
    %821 = vmatprep.subr.mxu0 0.0
    %822 = vmatpush1.msra.mxu0 0.0
    %823 = vmatprep.subr.mxu0 0.0
    %824 = vmatpush1.msra.mxu0 0.0
    %825 = vmatprep.subr.mxu0 0.0
    %826 = vmatpush1.msra.mxu0 0.0
    %827 = vmatprep.subr.mxu0 0.0
    %828 = vmatpush1.msra.mxu0 0.0
    %829 = vmatprep.subr.mxu0 0.0
    %830 = vmatpush1.msra.mxu0 0.0
    %831 = vmatprep.subr.mxu0 0.0
    %832 = vmatpush1.msra.mxu0 0.0
    %833 = vmatprep.subr.mxu0 0.0
    %834 = vmatpush1.msra.mxu0 0.0
    %835 = vmatprep.subr.mxu0 0.0
    %836 = vmatpush1.msra.mxu0 0.0
    %837 = vmatprep.subr.mxu0 0.0
    %838 = vmatpush1.msra.mxu0 0.0
    %839 = vmatprep.subr.mxu0 0.0
    %840 = vmatpush1.msra.mxu0 0.0
    %841 = vmatprep.subr.mxu0 0.0
    %842 = vmatpush1.msra.mxu0 0.0
    %843 = vmatprep.subr.mxu0 0.0
    %844 = vmatpush1.msra.mxu0 0.0
    %845 = vmatprep.subr.mxu0 0.0
    %846 = vmatpush1.msra.mxu0 0.0
    %847 = vmatprep.subr.mxu0 0.0
    %848 = vmatpush1.msra.mxu0 0.0
    %849 = vmatprep.subr.mxu0 0.0
    %850 = vmatpush1.msra.mxu0 0.0
    %851 = vmatprep.subr.mxu0 0.0
    %852 = vmatpush1.msra.mxu0 0.0
    %853 = vmatprep.subr.mxu0 0.0
    %854 = vmatpush1.msra.mxu0 0.0
    %855 = vmatprep.subr.mxu0 0.0
    %856 = vmatpush1.msra.mxu0 0.0
    %857 = vmatprep.mubr.f32.mxu0 0.0
    %858 = vmatmul.mubr.f32.gmra.mrb[0].mxu0 %v791
    %v859 = vpop.f32.mrb[0].mxu0
    %v860 = vadd.f32 0.0, %v859
    %v861 = vpop.f32.mrb[0].mxu0
    %862 = vdwg.mxu0
    %v863 = vadd.f32 %v157, %v860
    %v864 = vxor.u32 %v863, 2147483648
    %v865 = vmul.f32 %v864, 1.442695
    %v866 = vpow.pop %v865
    %v867 = vadd.f32 %v866, 1.0
    %v868 = vrcp.pop %v867
    %v869 = vmul.f32 1.0, %v868
    %v870 = vtanh.pop %v863
    %v871 = vmul.f32 %v869, %v777
    %873 = vrot.lane.b32.xlu0 %v870, 64
    %v874 = vpop.permute.xlu0 %873
    %v876 = vmul.f32 %v869, %v874
    %878 = vrot.lane.b32.xlu0 %v876, 32
    %v879 = vpop.permute.xlu0 %878
    %v881 = vadd.f32 %v871, %v879
    %v882 = vtanh.pop %v881
    %884 = vrot.lane.b32.xlu0 %v882, 64
    %v885 = vpop.permute.xlu0 %884
    %v887 = vmul.f32 %v869, %v885
    %889 = vrot.lane.b32.xlu0 %v887, 96
    %v890 = vpop.permute.xlu0 %889
    %892 = vst.msk [vmem:[#allocation2 + $0x8] sm:$0xff] %vm479, %v890
    %893 = vrot.lane.b32.xlu0 %v887, 32
    %v894 = vpop.permute.xlu0 %893
    %v895 = vsel %vm169, %v894, 0
    %897 = vmatprep.subr.mxu0 0.0
    %898 = vmatpush1.msra.mxu0 %v165
    %899 = vmatprep.subr.mxu0 0.0
    %900 = vmatpush1.msra.mxu0 %v166
    %901 = vmatprep.subr.mxu0 0.0
    %902 = vmatpush1.msra.mxu0 %v167
    %903 = vmatprep.subr.mxu0 0.0
    %904 = vmatpush1.msra.mxu0 %v168
    %905 = vmatprep.subr.mxu0 0.0
    %906 = vmatpush1.msra.mxu0 0.0
    %907 = vmatprep.subr.mxu0 0.0
    %908 = vmatpush1.msra.mxu0 0.0
    %909 = vmatprep.subr.mxu0 0.0
    %910 = vmatpush1.msra.mxu0 0.0
    %911 = vmatprep.subr.mxu0 0.0
    %912 = vmatpush1.msra.mxu0 0.0
    %913 = vmatprep.subr.mxu0 0.0
    %914 = vmatpush1.msra.mxu0 0.0
    %915 = vmatprep.subr.mxu0 0.0
    %916 = vmatpush1.msra.mxu0 0.0
    %917 = vmatprep.subr.mxu0 0.0
    %918 = vmatpush1.msra.mxu0 0.0
    %919 = vmatprep.subr.mxu0 0.0
    %920 = vmatpush1.msra.mxu0 0.0
    %921 = vmatprep.subr.mxu0 0.0
    %922 = vmatpush1.msra.mxu0 0.0
    %923 = vmatprep.subr.mxu0 0.0
    %924 = vmatpush1.msra.mxu0 0.0
    %925 = vmatprep.subr.mxu0 0.0
    %926 = vmatpush1.msra.mxu0 0.0
    %927 = vmatprep.subr.mxu0 0.0
    %928 = vmatpush1.msra.mxu0 0.0
    %929 = vmatprep.subr.mxu0 0.0
    %930 = vmatpush1.msra.mxu0 0.0
    %931 = vmatprep.subr.mxu0 0.0
    %932 = vmatpush1.msra.mxu0 0.0
    %933 = vmatprep.subr.mxu0 0.0
    %934 = vmatpush1.msra.mxu0 0.0
    %935 = vmatprep.subr.mxu0 0.0
    %936 = vmatpush1.msra.mxu0 0.0
    %937 = vmatprep.subr.mxu0 0.0
    %938 = vmatpush1.msra.mxu0 0.0
    %939 = vmatprep.subr.mxu0 0.0
    %940 = vmatpush1.msra.mxu0 0.0
    %941 = vmatprep.subr.mxu0 0.0
    %942 = vmatpush1.msra.mxu0 0.0
    %943 = vmatprep.subr.mxu0 0.0
    %944 = vmatpush1.msra.mxu0 0.0
    %945 = vmatprep.subr.mxu0 0.0
    %946 = vmatpush1.msra.mxu0 0.0
    %947 = vmatprep.subr.mxu0 0.0
    %948 = vmatpush1.msra.mxu0 0.0
    %949 = vmatprep.subr.mxu0 0.0
    %950 = vmatpush1.msra.mxu0 0.0
    %951 = vmatprep.subr.mxu0 0.0
    %952 = vmatpush1.msra.mxu0 0.0
    %953 = vmatprep.subr.mxu0 0.0
    %954 = vmatpush1.msra.mxu0 0.0
    %955 = vmatprep.subr.mxu0 0.0
    %956 = vmatpush1.msra.mxu0 0.0
    %957 = vmatprep.subr.mxu0 0.0
    %958 = vmatpush1.msra.mxu0 0.0
    %959 = vmatprep.subr.mxu0 0.0
    %960 = vmatpush1.msra.mxu0 0.0
    %961 = vmatprep.mubr.f32.mxu0 0.0
    %962 = vmatmul.mubr.f32.gmra.mrb[0].mxu0 %v895
    %v963 = vpop.f32.mrb[0].mxu0
    %v964 = vadd.f32 0.0, %v963
    %v965 = vpop.f32.mrb[0].mxu0
    %966 = vdwg.mxu0
    %v967 = vadd.f32 %v162, %v964
    %v968 = vxor.u32 %v967, 2147483648
    %v969 = vmul.f32 %v968, 1.442695
    %v970 = vpow.pop %v969
    %v971 = vadd.f32 %v970, 1.0
    %v972 = vrcp.pop %v971
    %v973 = vmul.f32 1.0, %v972
    %v974 = vtanh.pop %v967
    %v975 = vmul.f32 %v973, %v881
    %977 = vrot.lane.b32.xlu0 %v974, 64
    %v978 = vpop.permute.xlu0 %977
    %v980 = vmul.f32 %v973, %v978
    %982 = vrot.lane.b32.xlu0 %v980, 32
    %v983 = vpop.permute.xlu0 %982
    %v985 = vadd.f32 %v975, %v983
    %v986 = vtanh.pop %v985
    %988 = vrot.lane.b32.xlu0 %v986, 64
    %v989 = vpop.permute.xlu0 %988
    %v991 = vmul.f32 %v973, %v989
    %992 = vst.msk [vmem:[#allocation2 + $0x8] sm:$0xff] %vm580, %v991
    // Predicated region
    $region18: #{tpu_custom_call.1} parent=1 // pred_check
      _
    $region19: #{tpu_custom_call.1} parent=1 // pred_check_branch
      %994 = sbr.rel (0) target = $region21
    $region20: #{tpu_custom_call.1} parent=1 // pred_region
      %s996 = ssub.s32 256, 256
      %997 = vsyncadd [#allocation3], %s996
      %s999 = sshll.u32 [#allocation2], 4
      %s1000 = int_to_ptr.vmem [resolvable:$true] %s999
      %1002 = dma.vmem_to_hbm [thread:$0]  %s1000, 256, %s4, [#allocation3]
    $region21: #{tpu_custom_call.1} parent=1 // pred_fallthru
      _
    // Predicated region
    $region22: #{tpu_custom_call.1} parent=1 // pred_check
      _
    $region23: #{tpu_custom_call.1} parent=1 // pred_check_branch
      %1004 = sbr.rel (0) target = $region25
    $region24: #{tpu_custom_call.1} parent=1 // pred_region
      %1005 = dma.done [#allocation3], 256
    $region25: #{tpu_custom_call.1} parent=1 // pred_fallthru
      _
    %1006 = vsyncpa [#allocation3], 1

</llo_original>
